<compile_context>
chip_gen: v6e
topology: v6e:2x2x1
jax: 0.10.0
libtpu: 0.0.40
codegen_flags: <defaults>
</compile_context>

<pallas_src>
import functools

import jax
import jax.numpy as jnp
from jax import lax
from jax.experimental import pallas as pl
from jax.experimental.pallas import tpu as pltpu


_LANE = 128


def _round_up(x, m):
    return (x + m - 1) // m * m


# ----------------------------------------------------------------------------
# Pallas kernel: fully fused ClusterAssignment.forward
# ----------------------------------------------------------------------------
def _cluster_assign_kernel(x_ref, w_ref, b_ref, ct_ref, csq_ref, o_ref, *,
                           inv_alpha, power):
    """Fused:
         h         = relu(x @ W + b)                                  (tb, F)
         norm_sq   = ||h||^2 + ||c||^2 - 2 h @ c^T   (clamped at 0)   (tb, C)
         numerator = (1 / (1 + norm_sq/alpha)) ** power
         out       = numerator / sum(numerator, axis=1)
       Both matmuls run on the MXU in bf16 with f32 accumulation; the
       Student-t divide uses the approx EUP reciprocal, the final row
       normalization uses an exact divide.
    """
    # Linear + ReLU, bf16 x/W with f32 accumulation; bias added in f32.
    h = jnp.maximum(
        jnp.dot(x_ref[...], w_ref[...], preferred_element_type=jnp.float32)
        + b_ref[...],
        0.0)                                                     # (tb, F) f32

    h_sq = jnp.sum(h * h, axis=1, keepdims=True)                 # (tb, 1) f32
    cross = jnp.dot(h.astype(ct_ref.dtype), ct_ref[...],
                    preferred_element_type=jnp.float32)          # (tb, C) MXU

    # Expanded-form distance can go slightly negative from cancellation.
    norm_sq = jnp.maximum(h_sq + csq_ref[...] - 2.0 * cross, 0.0)

    # Student-t numerator: approx divide on the EUP.
    numer = pl.reciprocal(1.0 + norm_sq * inv_alpha, approx=True)
    if power != 1.0:                        # static (trace-time) branch
        if float(power).is_integer():
            numer = lax.integer_pow(numer, int(power))   # VALU multiplies
        else:
            numer = numer ** power                       # exp(log) on EUP
    denom = jnp.sum(numer, axis=1, keepdims=True)
    # Exact divide so output rows sum to 1 to f32 rounding (simplex constraint).
    o_ref[...] = numer / denom


# ----------------------------------------------------------------------------
# Wrapper
# ----------------------------------------------------------------------------
@functools.partial(jax.jit, static_argnames=("alpha", "block_b"))
def cluster_assignment(features, w, b, centers, alpha=1.0, block_b=None):
    """ClusterAssignment.forward.

    features : (B, R)   input batch
    w        : (R, C)   linear weight, pre-transposed (torch stores (C, R))
    b        : (C,) or (1, C) linear bias
    centers  : (C, R)   cluster_centers parameter (module layout)
    """
    B, R = features.shape
    Rw, C = w.shape
    assert Rw == R
    assert centers.shape == (C, R)
    # Original torch broadcasting (B,1,C) - (C,R) requires C == R.
    assert C == R, "num_classes must equal representation_dim (module constraint)"

    inv_alpha = 1.0 / float(alpha)
    power = float(alpha + 1.0) / 2.0
    mat_dtype = jnp.bfloat16                      # MXU input dtype

    # --- batch tiling --------------------------------------------------------
    # >= 2 grid steps whenever B >= 16 (megacore), capped at 512 rows/tile.
    if block_b is None:
        if B >= 16:
            block_b = min(512, _round_up(pl.cdiv(B, 2), 8))
        else:
            block_b = _round_up(B, 8)
    assert block_b % 8 == 0
    B_pad = _round_up(B, block_b)                 # ragged batches are padded
    grid = (B_pad // block_b,)

    # --- lane-dense padding of feature / class dims --------------------------
    F = C                                         # feature dim of h (== R == C)
    R_pad = _round_up(R, _LANE)
    F_pad = _round_up(F, _LANE)
    C_pad = _round_up(C, _LANE)

    x_p = jnp.zeros((B_pad, R_pad), mat_dtype).at[:B, :R].set(
        features.astype(mat_dtype))
    w_p = jnp.zeros((R_pad, F_pad), mat_dtype).at[:R, :C].set(
        w.astype(mat_dtype))
    b_p = jnp.zeros((1, F_pad), jnp.float32).at[:, :C].set(
        jnp.reshape(b, (1, C)).astype(jnp.float32))

    ct = centers.astype(mat_dtype)                # (C, R) bf16
    ct_p = jnp.zeros((F_pad, C_pad), mat_dtype).at[:R, :C].set(ct.T)
    # ||c||^2 hoisted out of the kernel (grid-invariant); computed from the
    # bf16-rounded centers for consistency with the bf16 cross term.  Padded
    # classes get a huge value so their numerator underflows to ~0.
    c_sq = jnp.sum(ct.astype(jnp.float32) ** 2, axis=1)[None, :]          # (1, C)
    c_sq_p = jnp.full((1, C_pad), jnp.float32(1e30)).at[:, :C].set(c_sq)

    # --- VMEM budget ----------------------------------------------------------
    est = (2 * block_b * R_pad * 2          # x tile, double-buffered bf16
           + 2 * block_b * C_pad * 4        # out tile, double-buffered f32
           + R_pad * F_pad * 2              # W, single-buffered bf16
           + F_pad * C_pad * 2              # centers^T, single-buffered bf16
           + 2 * C_pad * 4                  # bias + ||c||^2
           + 5 * block_b * C_pad * 4)       # live f32 intermediates
    vmem_limit = int(min(max(2 * est, 16 << 20), 48 << 20))

    kernel = functools.partial(_cluster_assign_kernel,
                               inv_alpha=inv_alpha, power=power)
    out = pl.pallas_call(
        kernel,
        out_shape=jax.ShapeDtypeStruct((B_pad, C_pad), jnp.float32),
        grid_spec=pltpu.PrefetchScalarGridSpec(
            num_scalar_prefetch=0,
            grid=grid,
            in_specs=[
                # x tile: streamed, default double-buffering.
                pl.BlockSpec((block_b, R_pad), lambda i: (i, 0)),
                # Grid-invariant operands: single-buffered (constant index_map).
                pl.BlockSpec((R_pad, F_pad), lambda i: (0, 0),
                             pipeline_mode=pl.Buffered(1)),
                pl.BlockSpec((1, F_pad), lambda i: (0, 0),
                             pipeline_mode=pl.Buffered(1)),
                pl.BlockSpec((F_pad, C_pad), lambda i: (0, 0),
                             pipeline_mode=pl.Buffered(1)),
                pl.BlockSpec((1, C_pad), lambda i: (0, 0),
                             pipeline_mode=pl.Buffered(1)),
            ],
            out_specs=pl.BlockSpec((block_b, C_pad), lambda i: (i, 0)),
        ),
        compiler_params=pltpu.CompilerParams(
            dimension_semantics=("parallel",),
            vmem_limit_bytes=vmem_limit),
    )(x_p, w_p, b_p, ct_p, c_sq_p)

    return out[:B, :C]


# ----------------------------------------------------------------------------
# Helpers: init + pure-JAX reference (exact module semantics, f32)
# ----------------------------------------------------------------------------
def _xavier(key, shape):
    fan_in, fan_out = shape[0], shape[1]
    limit = jnp.sqrt(6.0 / (fan_in + fan_out))
    return jax.random.uniform(key, shape, jnp.float32, -limit, limit)


def _reference(x, w, b, centers, alpha):
    h = jnp.maximum(x @ w + jnp.reshape(b, (1, -1)), 0.0)
    norm_sq = jnp.sum((h[:, None, :] - centers[None, :, :]) ** 2, axis=2)
    numer = 1.0 / (1.0 + norm_sq / alpha)
    power = float(alpha + 1.0) / 2.0
    numer = numer ** power
    return numer / jnp.sum(numer, axis=1, keepdims=True)


# ----------------------------------------------------------------------------
if __name__ == "__main__":
    B = 8
    repr_dim = 8
    num_classes = 8          # must equal repr_dim for the module's broadcast

    root = jax.random.PRNGKey(0)
    k_w, k_c, k_x = jax.random.split(root, 3)
    w = _xavier(k_w, (repr_dim, num_classes))          # pre-transposed weight
    b = jnp.zeros((1, num_classes), jnp.float32)
    centers = _xavier(k_c, (num_classes, repr_dim))    # module layout
    x = jax.random.normal(k_x, (B, repr_dim), jnp.float32)

    ok = True

    # alpha = 1.0 (default): power == 1, pow path skipped entirely.
    predict = jax.block_until_ready(cluster_assignment(x, w, b, centers,
                                                       alpha=1.0))
    expect = _reference(x, w, b, centers, 1.0)
    ok &= predict.shape == (B, num_classes)
    ok &= bool(jnp.allclose(jnp.sum(predict, axis=1), 1.0, atol=1e-3))
    ok &= bool(jnp.allclose(predict, expect, atol=2e-2, rtol=2e-2))

    # alpha = 3.0: power == 2.0 -> integer_pow path exercised.
    predict3 = jax.block_until_ready(cluster_assignment(x, w, b, centers,
                                                        alpha=3.0))
    expect3 = _reference(x, w, b, centers, 3.0)
    ok &= bool(jnp.allclose(jnp.sum(predict3, axis=1), 1.0, atol=1e-3))
    ok &= bool(jnp.allclose(predict3, expect3, atol=2e-2, rtol=2e-2))

    assert ok
    print("KERNEL_OK")
</pallas_src>

<mosaic_0001>
module attributes {stable_mosaic.version = 11 : i64} {
  func.func @_cluster_assign_kernel(%arg0: i32, %arg1: memref<8x128xbf16, #tpu.memory_space<vmem>>, %arg2: memref<128x128xbf16, #tpu.memory_space<vmem>>, %arg3: memref<1x128xf32, #tpu.memory_space<vmem>>, %arg4: memref<128x128xbf16, #tpu.memory_space<vmem>>, %arg5: memref<1x128xf32, #tpu.memory_space<vmem>>, %arg6: memref<8x128xf32, #tpu.memory_space<vmem>>) attributes {dimension_semantics = [#tpu.dimension_semantics<parallel>], iteration_bounds = array<i64: 1>, scalar_prefetch = 0 : i64, scratch_operands = 0 : i64, tpu.core_type = #tpu.core_type<tc>, window_params = [{transform_indices = @transform_0, window_bounds = array<i64: 8, 128>}, {pipeline_mode = #tpu.pipeline_mode<synchronous>, transform_indices = @transform_1, window_bounds = array<i64: 128, 128>}, {pipeline_mode = #tpu.pipeline_mode<synchronous>, transform_indices = @transform_2, window_bounds = array<i64: 1, 128>}, {pipeline_mode = #tpu.pipeline_mode<synchronous>, transform_indices = @transform_3, window_bounds = array<i64: 128, 128>}, {pipeline_mode = #tpu.pipeline_mode<synchronous>, transform_indices = @transform_4, window_bounds = array<i64: 1, 128>}, {transform_indices = @transform_5, window_bounds = array<i64: 8, 128>}]} {
    %c0 = arith.constant 0 : index
    %c0_0 = arith.constant 0 : index
    %0 = vector.load %arg1[%c0, %c0_0] : memref<8x128xbf16, #tpu.memory_space<vmem>>, vector<8x128xbf16>
    %c0_1 = arith.constant 0 : index
    %c0_2 = arith.constant 0 : index
    %1 = vector.load %arg2[%c0_1, %c0_2] : memref<128x128xbf16, #tpu.memory_space<vmem>>, vector<128x128xbf16>
    %cst = arith.constant dense<0.000000e+00> : vector<8x128xf32>
    %2 = tpu.matmul %0, %1, %cst {dimension_numbers = #tpu.dot_dimension_numbers<[1], [0], [0], [1], [0, 0, 1, 1], [], []>} : vector<8x128xbf16>, vector<128x128xbf16>, vector<8x128xf32> -> vector<8x128xf32>
    %c0_3 = arith.constant 0 : index
    %c0_4 = arith.constant 0 : index
    %3 = vector.load %arg3[%c0_3, %c0_4] : memref<1x128xf32, #tpu.memory_space<vmem>>, vector<1x128xf32>
    %4 = vector.broadcast %3 : vector<1x128xf32> to vector<8x128xf32>
    %5 = arith.addf %2, %4 : vector<8x128xf32>
    %cst_5 = arith.constant 0.000000e+00 : f32
    %6 = vector.broadcast %cst_5 : f32 to vector<8x128xf32>
    %7 = arith.maximumf %5, %6 : vector<8x128xf32>
    %8 = arith.mulf %7, %7 : vector<8x128xf32>
    %cst_6 = arith.constant dense<0.000000e+00> : vector<8xf32>
    %9 = vector.multi_reduction <add>, %8, %cst_6 [1] : vector<8x128xf32> to vector<8xf32>
    %10 = vector.shape_cast %9 : vector<8xf32> to vector<8x1xf32>
    %11 = arith.truncf %7 : vector<8x128xf32> to vector<8x128xbf16>
    %c0_7 = arith.constant 0 : index
    %c0_8 = arith.constant 0 : index
    %12 = vector.load %arg4[%c0_7, %c0_8] : memref<128x128xbf16, #tpu.memory_space<vmem>>, vector<128x128xbf16>
    %cst_9 = arith.constant dense<0.000000e+00> : vector<8x128xf32>
    %13 = tpu.matmul %11, %12, %cst_9 {dimension_numbers = #tpu.dot_dimension_numbers<[1], [0], [0], [1], [0, 0, 1, 1], [], []>} : vector<8x128xbf16>, vector<128x128xbf16>, vector<8x128xf32> -> vector<8x128xf32>
    %c0_10 = arith.constant 0 : index
    %c0_11 = arith.constant 0 : index
    %14 = vector.load %arg5[%c0_10, %c0_11] : memref<1x128xf32, #tpu.memory_space<vmem>>, vector<1x128xf32>
    %15 = vector.broadcast %10 : vector<8x1xf32> to vector<8x128xf32>
    %16 = vector.broadcast %14 : vector<1x128xf32> to vector<8x128xf32>
    %17 = arith.addf %15, %16 : vector<8x128xf32>
    %cst_12 = arith.constant 2.000000e+00 : f32
    %18 = vector.broadcast %cst_12 : f32 to vector<8x128xf32>
    %19 = arith.mulf %18, %13 : vector<8x128xf32>
    %20 = arith.subf %17, %19 : vector<8x128xf32>
    %cst_13 = arith.constant 0.000000e+00 : f32
    %21 = vector.broadcast %cst_13 : f32 to vector<8x128xf32>
    %22 = arith.maximumf %20, %21 : vector<8x128xf32>
    %cst_14 = arith.constant 1.000000e+00 : f32
    %23 = vector.broadcast %cst_14 : f32 to vector<8x128xf32>
    %24 = arith.mulf %22, %23 : vector<8x128xf32>
    %cst_15 = arith.constant 1.000000e+00 : f32
    %25 = vector.broadcast %cst_15 : f32 to vector<8x128xf32>
    %26 = arith.addf %25, %24 : vector<8x128xf32>
    %27 = tpu.reciprocal %26 {approx = true} : vector<8x128xf32> -> vector<8x128xf32>
    %cst_16 = arith.constant dense<0.000000e+00> : vector<8xf32>
    %28 = vector.multi_reduction <add>, %27, %cst_16 [1] : vector<8x128xf32> to vector<8xf32>
    %29 = vector.shape_cast %28 : vector<8xf32> to vector<8x1xf32>
    %30 = vector.broadcast %29 : vector<8x1xf32> to vector<8x128xf32>
    %31 = arith.divf %27, %30 : vector<8x128xf32>
    %c0_17 = arith.constant 0 : index
    %c0_18 = arith.constant 0 : index
    %32 = vector.load %arg6[%c0_17, %c0_18] : memref<8x128xf32, #tpu.memory_space<vmem>>, vector<8x128xf32>
    tpu.vector_store %arg6[%c0_17, %c0_18], %31 {strides = array<i32>} : memref<8x128xf32, #tpu.memory_space<vmem>>, vector<8x128xf32>,
    return
  }
  func.func @transform_0(%arg0: i32) -> (i32, i32) {
    %c0_i32 = arith.constant 0 : i32
    %c0_i32_0 = arith.constant 0 : i32
    return %arg0, %c0_i32 : i32, i32
  }
  func.func @transform_1(%arg0: i32) -> (i32, i32) {
    %c0_i32 = arith.constant 0 : i32
    %c0_i32_0 = arith.constant 0 : i32
    %c0_i32_1 = arith.constant 0 : i32
    return %c0_i32, %c0_i32_0 : i32, i32
  }
  func.func @transform_2(%arg0: i32) -> (i32, i32) {
    %c0_i32 = arith.constant 0 : i32
    %c0_i32_0 = arith.constant 0 : i32
    %c0_i32_1 = arith.constant 0 : i32
    return %c0_i32, %c0_i32_0 : i32, i32
  }
  func.func @transform_3(%arg0: i32) -> (i32, i32) {
    %c0_i32 = arith.constant 0 : i32
    %c0_i32_0 = arith.constant 0 : i32
    %c0_i32_1 = arith.constant 0 : i32
    return %c0_i32, %c0_i32_0 : i32, i32
  }
  func.func @transform_4(%arg0: i32) -> (i32, i32) {
    %c0_i32 = arith.constant 0 : i32
    %c0_i32_0 = arith.constant 0 : i32
    %c0_i32_1 = arith.constant 0 : i32
    return %c0_i32, %c0_i32_0 : i32, i32
  }
  func.func @transform_5(%arg0: i32) -> (i32, i32) {
    %c0_i32 = arith.constant 0 : i32
    %c0_i32_0 = arith.constant 0 : i32
    return %arg0, %c0_i32 : i32, i32
  }
}

</mosaic_0001>

<llo_original>
// kernel: cluster_assignment.1
$region0: #{cluster_assignment.1}
  #allocation0 [shape = 'u32[]', space=smem, size = 0x4, offset = 0x4, fixed_abs, tag = 'smem constant byte address 0x4 - core index']
  #allocation1 [shape = 'u32[144,128]{1,0:T(1,128)}', space=vmem, size = 0x12000, scoped, tag = 'internal scratch']
  %s0 = inlined_call_operand.vmem [shape: bf16[8,128], index: 0, kind: input, shape index: {}]
  %s1 = inlined_call_operand.vmem [shape: bf16[128,128], index: 1, kind: input, shape index: {}]
  %s2 = inlined_call_operand.vmem [shape: f32[1,128], index: 2, kind: input, shape index: {}]
  %s3 = inlined_call_operand.vmem [shape: bf16[128,128], index: 3, kind: input, shape index: {}]
  %s4 = inlined_call_operand.vmem [shape: f32[1,128], index: 4, kind: input, shape index: {}]
  %s5 = inlined_call_operand.hbm [shape: f32[8,128], index: 5, kind: output, shape index: {}]
  %s6 = sld [smem:[#allocation0]]
  $region30: #{cluster_assignment.1} parent=0
    _
  %s8 = ssub.s32 1, %s6
  %s9 = scalar_select 0, %s8, %s6
  $region1: #{cluster_assignment.1} parent=0
    #allocation2 [shape = 'u8[4096]{0}', space=vmem, size = 0x1000, scoped, tag = 'output window, operand 0, single buffered']
    #allocation3 [shape = 's32[1]{0}', space=sflag, size = 0x4, scoped, tag = 'scoped memory for cluster_assignment.1']
    %10 = vsyncpa [#allocation3], 0
    // Predicated region
    $region2: #{cluster_assignment.1} parent=1 // pred_check
      _
    $region3: #{cluster_assignment.1} parent=1 // pred_check_branch
      %12 = sbr.rel (0) target = $region5
    $region4: #{cluster_assignment.1} parent=1 // pred_region
      _
    $region5: #{cluster_assignment.1} parent=1 // pred_fallthru
      _
    // Predicated region
    $region6: #{cluster_assignment.1} parent=1 // pred_check
      _
    $region7: #{cluster_assignment.1} parent=1 // pred_check_branch
      %14 = sbr.rel (0) target = $region9
    $region8: #{cluster_assignment.1} parent=1 // pred_region
      _
    $region9: #{cluster_assignment.1} parent=1 // pred_fallthru
      _
    // Predicated region
    $region10: #{cluster_assignment.1} parent=1 // pred_check
      _
    $region11: #{cluster_assignment.1} parent=1 // pred_check_branch
      %16 = sbr.rel (0) target = $region13
    $region12: #{cluster_assignment.1} parent=1 // pred_region
      _
    $region13: #{cluster_assignment.1} parent=1 // pred_fallthru
      _
    // Predicated region
    $region14: #{cluster_assignment.1} parent=1 // pred_check
      _
    $region15: #{cluster_assignment.1} parent=1 // pred_check_branch
      %18 = sbr.rel (0) target = $region17
    $region16: #{cluster_assignment.1} parent=1 // pred_region
      _
    $region17: #{cluster_assignment.1} parent=1 // pred_fallthru
      _
    // Predicated region
    $region18: #{cluster_assignment.1} parent=1 // pred_check
      _
    $region19: #{cluster_assignment.1} parent=1 // pred_check_branch
      %20 = sbr.rel (0) target = $region21
    $region20: #{cluster_assignment.1} parent=1 // pred_region
      _
    $region21: #{cluster_assignment.1} parent=1 // pred_fallthru
      _
    %v22 = vld [vmem:[%s0] sm:$0xf]
    %v23 = vld [vmem:[%s1] sm:$0xf]
    %v24 = vld [vmem:[%s1 + $0x4] sm:$0xf]
    %v25 = vld [vmem:[%s1 + $0x8] sm:$0xf]
    %v26 = vld [vmem:[%s1 + $0xc] sm:$0xf]
    %v27 = vld [vmem:[%s1 + $0x10] sm:$0xf]
    %v28 = vld [vmem:[%s1 + $0x14] sm:$0xf]
    %v29 = vld [vmem:[%s1 + $0x18] sm:$0xf]
    %v30 = vld [vmem:[%s1 + $0x1c] sm:$0xf]
    %v31 = vld [vmem:[%s1 + $0x20] sm:$0xf]
    %v32 = vld [vmem:[%s1 + $0x24] sm:$0xf]
    %v33 = vld [vmem:[%s1 + $0x28] sm:$0xf]
    %v34 = vld [vmem:[%s1 + $0x2c] sm:$0xf]
    %v35 = vld [vmem:[%s1 + $0x30] sm:$0xf]
    %v36 = vld [vmem:[%s1 + $0x34] sm:$0xf]
    %v37 = vld [vmem:[%s1 + $0x38] sm:$0xf]
    %v38 = vld [vmem:[%s1 + $0x3c] sm:$0xf]
    %v39 = vld [vmem:[%s2] sm:$0x1]
    %v41 = vlaneseq
    %v42 = vshrl.u32 %v41, 7
    %v43 = vsub.s32 0, %v42
    %v44 = vrot.slane %v39, %v43
    %v62 = vunpack.c.l.b16 %v23
    %v63 = vunpack.c.l.b16 %v24
    %v64 = vunpack.c.l.b16 %v25
    %v65 = vunpack.c.l.b16 %v26
    %v66 = vunpack.c.l.b16 %v27
    %v67 = vunpack.c.l.b16 %v28
    %v68 = vunpack.c.l.b16 %v29
    %v69 = vunpack.c.l.b16 %v30
    %v70 = vunpack.c.l.b16 %v31
    %v71 = vunpack.c.l.b16 %v32
    %v72 = vunpack.c.l.b16 %v33
    %v73 = vunpack.c.l.b16 %v34
    %v74 = vunpack.c.l.b16 %v35
    %v75 = vunpack.c.l.b16 %v36
    %v76 = vunpack.c.l.b16 %v37
    %v77 = vunpack.c.l.b16 %v38
    %v78 = vpack.c.b16 %v63, %v62
    %v79 = vpack.c.b16 %v65, %v64
    %v80 = vpack.c.b16 %v67, %v66
    %v81 = vpack.c.b16 %v69, %v68
    %v82 = vpack.c.b16 %v71, %v70
    %v83 = vpack.c.b16 %v73, %v72
    %v84 = vpack.c.b16 %v75, %v74
    %v85 = vpack.c.b16 %v77, %v76
    %94 = vmatprep.subr.bf16.mxu0 0
    %95 = vmatpush1.bf16.msra.mxu0 %v85
    %96 = vmatprep.subr.bf16.mxu0 0
    %97 = vmatpush1.bf16.msra.mxu0 %v84
    %98 = vmatprep.subr.bf16.mxu0 0
    %99 = vmatpush1.bf16.msra.mxu0 %v83
    %100 = vmatprep.subr.bf16.mxu0 0
    %101 = vmatpush1.bf16.msra.mxu0 %v82
    %102 = vmatprep.subr.bf16.mxu0 0
    %103 = vmatpush1.bf16.msra.mxu0 %v81
    %104 = vmatprep.subr.bf16.mxu0 0
    %105 = vmatpush1.bf16.msra.mxu0 %v80
    %106 = vmatprep.subr.bf16.mxu0 0
    %107 = vmatpush1.bf16.msra.mxu0 %v79
    %108 = vmatprep.subr.bf16.mxu0 0
    %109 = vmatpush1.bf16.msra.mxu0 %v78
    %110 = vmatprep.subr.bf16.mxu0 0
    %111 = vmatpush2.bf16.msra.mxu0 0
    %112 = vmatprep.subr.bf16.mxu0 0
    %113 = vmatpush2.bf16.msra.mxu0 0
    %114 = vmatprep.subr.bf16.mxu0 0
    %115 = vmatpush2.bf16.msra.mxu0 0
    %116 = vmatprep.subr.bf16.mxu0 0
    %117 = vmatpush2.bf16.msra.mxu0 0
    %118 = vmatprep.subr.bf16.mxu0 0
    %119 = vmatpush2.bf16.msra.mxu0 0
    %120 = vmatprep.subr.bf16.mxu0 0
    %121 = vmatpush2.bf16.msra.mxu0 0
    %122 = vmatprep.subr.bf16.mxu0 0
    %123 = vmatpush2.bf16.msra.mxu0 0
    %124 = vmatprep.subr.bf16.mxu0 0
    %125 = vmatpush2.bf16.msra.mxu0 0
    %126 = vmatprep.mubr.bf16.mxu0 0
    %127 = vmatmul.mubr.bf16.gmra.mxu0 %v22
    %v128 = vpop.f32.mrf.mxu0
    %v129 = vadd.f32 %v44, %v128
    %v130 = vpop.f32.mrf.mxu0
    %v131 = vpop.f32.mrf.mxu0
    %v132 = vpop.f32.mrf.mxu0
    %133 = vdwg.mxu0
    %v134 = vmax.f32 %v129, 0.0
    %v135 = vmul.f32 %v134, %v134
    %136 = vadd.xlane.f32.xlu0 %v135
    %v137 = vpop.xlane.xlu0 %136
    %v138 = vpack.c.bf16 %v134, %v134
    %v139 = vld [vmem:[%s3] sm:$0xf]
    %v140 = vld [vmem:[%s3 + $0x4] sm:$0xf]
    %v141 = vld [vmem:[%s3 + $0x8] sm:$0xf]
    %v142 = vld [vmem:[%s3 + $0xc] sm:$0xf]
    %v143 = vld [vmem:[%s3 + $0x10] sm:$0xf]
    %v144 = vld [vmem:[%s3 + $0x14] sm:$0xf]
    %v145 = vld [vmem:[%s3 + $0x18] sm:$0xf]
    %v146 = vld [vmem:[%s3 + $0x1c] sm:$0xf]
    %v147 = vld [vmem:[%s3 + $0x20] sm:$0xf]
    %v148 = vld [vmem:[%s3 + $0x24] sm:$0xf]
    %v149 = vld [vmem:[%s3 + $0x28] sm:$0xf]
    %v150 = vld [vmem:[%s3 + $0x2c] sm:$0xf]
    %v151 = vld [vmem:[%s3 + $0x30] sm:$0xf]
    %v152 = vld [vmem:[%s3 + $0x34] sm:$0xf]
    %v153 = vld [vmem:[%s3 + $0x38] sm:$0xf]
    %v154 = vld [vmem:[%s3 + $0x3c] sm:$0xf]
    %v171 = vunpack.c.l.b16 %v139
    %v172 = vunpack.c.l.b16 %v140
    %v173 = vunpack.c.l.b16 %v141
    %v174 = vunpack.c.l.b16 %v142
    %v175 = vunpack.c.l.b16 %v143
    %v176 = vunpack.c.l.b16 %v144
    %v177 = vunpack.c.l.b16 %v145
    %v178 = vunpack.c.l.b16 %v146
    %v179 = vunpack.c.l.b16 %v147
    %v180 = vunpack.c.l.b16 %v148
    %v181 = vunpack.c.l.b16 %v149
    %v182 = vunpack.c.l.b16 %v150
    %v183 = vunpack.c.l.b16 %v151
    %v184 = vunpack.c.l.b16 %v152
    %v185 = vunpack.c.l.b16 %v153
    %v186 = vunpack.c.l.b16 %v154
    %v187 = vpack.c.b16 %v172, %v171
    %v188 = vpack.c.b16 %v174, %v173
    %v189 = vpack.c.b16 %v176, %v175
    %v190 = vpack.c.b16 %v178, %v177
    %v191 = vpack.c.b16 %v180, %v179
    %v192 = vpack.c.b16 %v182, %v181
    %v193 = vpack.c.b16 %v184, %v183
    %v194 = vpack.c.b16 %v186, %v185
    %203 = vmatprep.subr.bf16.mxu0 0
    %204 = vmatpush1.bf16.msra.mxu0 %v194
    %205 = vmatprep.subr.bf16.mxu0 0
    %206 = vmatpush1.bf16.msra.mxu0 %v193
    %207 = vmatprep.subr.bf16.mxu0 0
    %208 = vmatpush1.bf16.msra.mxu0 %v192
    %209 = vmatprep.subr.bf16.mxu0 0
    %210 = vmatpush1.bf16.msra.mxu0 %v191
    %211 = vmatprep.subr.bf16.mxu0 0
    %212 = vmatpush1.bf16.msra.mxu0 %v190
    %213 = vmatprep.subr.bf16.mxu0 0
    %214 = vmatpush1.bf16.msra.mxu0 %v189
    %215 = vmatprep.subr.bf16.mxu0 0
    %216 = vmatpush1.bf16.msra.mxu0 %v188
    %217 = vmatprep.subr.bf16.mxu0 0
    %218 = vmatpush1.bf16.msra.mxu0 %v187
    %219 = vmatprep.subr.bf16.mxu0 0
    %220 = vmatpush2.bf16.msra.mxu0 0
    %221 = vmatprep.subr.bf16.mxu0 0
    %222 = vmatpush2.bf16.msra.mxu0 0
    %223 = vmatprep.subr.bf16.mxu0 0
    %224 = vmatpush2.bf16.msra.mxu0 0
    %225 = vmatprep.subr.bf16.mxu0 0
    %226 = vmatpush2.bf16.msra.mxu0 0
    %227 = vmatprep.subr.bf16.mxu0 0
    %228 = vmatpush2.bf16.msra.mxu0 0
    %229 = vmatprep.subr.bf16.mxu0 0
    %230 = vmatpush2.bf16.msra.mxu0 0
    %231 = vmatprep.subr.bf16.mxu0 0
    %232 = vmatpush2.bf16.msra.mxu0 0
    %233 = vmatprep.subr.bf16.mxu0 0
    %234 = vmatpush2.bf16.msra.mxu0 0
    %235 = vmatprep.mubr.bf16.mxu0 0
    %236 = vmatmul.mubr.bf16.gmra.mxu0 %v138
    %v237 = vpop.f32.mrf.mxu0
    %v238 = vadd.f32 0.0, %v237
    %v239 = vpop.f32.mrf.mxu0
    %v240 = vpop.f32.mrf.mxu0
    %v241 = vpop.f32.mrf.mxu0
    %242 = vdwg.mxu0
    %v243 = vld [vmem:[%s4] sm:$0x1]
    %v245 = vlaneseq
    %v246 = vshrl.u32 %v245, 7
    %v247 = vsub.s32 0, %v246
    %v248 = vrot.slane %v243, %v247
    %v250 = vadd.f32 %v137, %v248
    %v251 = vmul.f32 %v238, 2.0
    %v252 = vsub.f32 %v250, %v251
    %v253 = vmax.f32 %v252, 0.0
    %v254 = vadd.f32 %v253, 1.0
    %v255 = vrcp.pop %v254
    %256 = vadd.xlane.f32.xlu0 %v255
    %v257 = vpop.xlane.xlu0 %256
    %v258 = vrcp.pop %v257
    %v259 = vmul.f32 %v255, %v258
    %260 = vst [vmem:[#allocation2] sm:$0xff] %v259
    // Predicated region
    $region22: #{cluster_assignment.1} parent=1 // pred_check
      _
    $region23: #{cluster_assignment.1} parent=1 // pred_check_branch
      %262 = sbr.rel (0) target = $region25
    $region24: #{cluster_assignment.1} parent=1 // pred_region
      %s264 = ssub.s32 128, 128
      %265 = vsyncadd [#allocation3], %s264
      %s267 = sshll.u32 [#allocation2], 4
      %s268 = int_to_ptr.vmem [resolvable:$true] %s267
      %270 = dma.vmem_to_hbm [thread:$0]  %s268, 128, %s5, [#allocation3]
    $region25: #{cluster_assignment.1} parent=1 // pred_fallthru
      _
    // Predicated region
    $region26: #{cluster_assignment.1} parent=1 // pred_check
      _
    $region27: #{cluster_assignment.1} parent=1 // pred_check_branch
      %272 = sbr.rel (0) target = $region29
    $region28: #{cluster_assignment.1} parent=1 // pred_region
      %273 = dma.done [#allocation3], 128
    $region29: #{cluster_assignment.1} parent=1 // pred_fallthru
      _
    %274 = vsyncpa [#allocation3], 1

</llo_original>
